<compile_context>
chip_gen: v7x
topology: tpu7x:2x2x1
jax: 0.10.0
libtpu: 0.0.40
codegen_flags: <defaults>
</compile_context>

<pallas_src>
import jax
import jax.numpy as jnp
from jax import lax
from jax.experimental import pallas as pl
from jax.experimental.pallas import tpu as pltpu


def _round_up(x, m):
    return ((x + m - 1) // m) * m


def _vmem_budget_bytes():
    """~75% of per-core VMEM (96 MiB on v5e/v6e, 48 MiB on v7x), clamped."""
    cap = None
    try:
        info = pltpu.get_tpu_info()
        cap = int(getattr(info, "vmem_capacity_bytes", 0)) or None
    except Exception:
        cap = None
    if cap is None:
        cap = 64 * 1024 * 1024          # conservative fallback: v7x per-TC VMEM
    return int(min(cap * 3 // 4, 100 * 1024 * 1024))


def _balanced_tile(total, max_tile, align):
    """Tile size (multiple of `align`, <= max_tile) minimizing padding of `total`."""
    total = _round_up(max(int(total), 1), align)
    if total <= max_tile:
        return total
    n0 = -(-total // max_tile)
    best_key, best_t = None, None
    for n in range(n0, n0 + 4):
        t = _round_up(-(-total // n), align)
        if t > max_tile:
            continue
        key = (n * t - total, n)        # (padding, number of tiles)
        if best_key is None or key < best_key:
            best_key, best_t = key, t
    return best_t


def _linear_single_k_kernel(x_ref, w_ref, o_ref):
    # Full-K fast path: one MXU pass straight into the output tile
    # (no accumulator scratch, no init/finalize).
    # x_ref: (tm, H), w_ref: (tq, H) -- contract both over the last axis.
    o_ref[...] = lax.dot_general(
        x_ref[...],
        w_ref[...],
        dimension_numbers=(((1,), (1,)), ((), ())),
        preferred_element_type=jnp.float32,
    ).astype(o_ref.dtype)


def _linear_acc_kernel(x_ref, w_ref, o_ref, acc_ref):
    # K-tiled accumulating matmul; k is the innermost ("arbitrary") grid axis.
    @pl.when(pl.program_id(2) == 0)
    def _():
        acc_ref[...] = jnp.zeros_like(acc_ref)

    acc_ref[...] += lax.dot_general(
        x_ref[...],
        w_ref[...],
        dimension_numbers=(((1,), (1,)), ((), ())),
        preferred_element_type=jnp.float32,
    )

    @pl.when(pl.program_id(2) == pl.num_programs(2) - 1)
    def _():
        o_ref[...] = acc_ref[...].astype(o_ref.dtype)


def mask_question_forward(x, weight, *, compute_dtype=jnp.bfloat16,
                          tm=None, tq=None, th=None):
    """y = x @ weight.T  (nn.Linear(hidden, ques_sum, bias=False)).

    weight keeps PyTorch layout [ques_sum, hidden]; the transpose is implicit in
    the kernel's contraction dims. MXU inputs are cast to `compute_dtype` (bf16
    by default; results differ from an f32 nn.Linear at ~1e-2 relative level),
    accumulation is f32, output dtype matches x.dtype.
    """
    orig_shape = x.shape
    out_dtype = x.dtype
    H = orig_shape[-1]
    Q, Hw = weight.shape
    assert Hw == H, "weight must be [ques_sum, hidden]"

    x2d = x.reshape(-1, H)
    M = x2d.shape[0]

    in_item = jnp.dtype(compute_dtype).itemsize
    out_item = jnp.dtype(out_dtype).itemsize
    budget = _vmem_budget_bytes()

    # ---------------- tile selection -----------------------------------------
    # bf16 packs 2 rows per sublane -> multiples of 16 keep vregs fully packed.
    m_align = 16 if in_item == 2 else 8
    if tm is None:
        tm = _balanced_tile(M, 512, m_align)
    assert tm % m_align == 0, f"tm must be a multiple of {m_align}"
    M_pad = _round_up(M, tm)

    if tq is None:
        tq = _balanced_tile(Q, 512, 128)
    assert tq % 128 == 0, "tq must be a multiple of 128 (lane-dense output)"
    Q_pad = _round_up(Q, tq)

    if th is None:
        # Full-K fast path whenever double-buffered tiles fit the VMEM budget.
        full_need = 2 * (tm + tq) * H * in_item + 2 * tm * tq * out_item
        if full_need <= budget:
            th = H
        else:
            h128 = _round_up(H, 128)
            for cand in (2048, 1024, 512, 256, 128):
                if cand >= h128:
                    continue
                need = (2 * (tm + tq) * cand * in_item
                        + 2 * tm * tq * out_item + tm * tq * 4)
                if need <= budget:
                    th = cand
                    break
            if th is None:
                raise ValueError("no K tile fits the VMEM budget; shrink tm/tq")

    if th == H:
        H_pad = H
    else:
        assert th % 128 == 0, "tiled th must be a multiple of 128"
        H_pad = _round_up(H, th)

    nm, nq, nk = M_pad // tm, Q_pad // tq, H_pad // th

    # ---------------- VMEM check + generation-aware limit --------------------
    if nk == 1:
        vmem_need = 2 * (tm + tq) * H_pad * in_item + 2 * tm * tq * out_item
    else:
        vmem_need = (2 * (tm + tq) * th * in_item
                     + 2 * tm * tq * out_item + tm * tq * 4)
    if vmem_need > budget:
        raise ValueError(
            f"tile config needs ~{vmem_need} bytes of VMEM but the budget is "
            f"{budget} bytes; shrink tm/tq/th")
    vmem_limit = int(min(budget, max(vmem_need * 3 // 2, 32 * 1024 * 1024)))

    # ---------------- streaming order: hold the costlier operand -------------
    x_bytes = M_pad * H_pad * in_item
    w_bytes = Q_pad * H_pad * in_item
    traffic_mq = x_bytes + nm * w_bytes   # m outer: X streamed once, W nm times
    traffic_qm = w_bytes + nq * x_bytes   # q outer: W streamed once, X nq times
    w_held = traffic_qm < traffic_mq
    out_bytes = M_pad * Q_pad * out_item

    cost = pl.CostEstimate(
        flops=2 * M_pad * Q_pad * H_pad,
        transcendentals=0,
        bytes_accessed=int(min(traffic_mq, traffic_qm) + out_bytes),
    )

    # ---------------- cast to compute dtype, then zero-pad (exact) -----------
    xc = x2d.astype(compute_dtype)
    wc = weight.astype(compute_dtype)
    if (M_pad, H_pad) != (M, H):
        xc = jnp.pad(xc, ((0, M_pad - M), (0, H_pad - H)))
    if (Q_pad, H_pad) != (Q, H):
        wc = jnp.pad(wc, ((0, Q_pad - Q), (0, H_pad - H)))

    # ---------------- pallas_call --------------------------------------------
    # TODO(synk): optionally benchmark a pre-transposed [H, Q] weight (standard
    # (m,k)x(k,n) contraction) vs. this implicit trans_b form.
    if nk == 1:
        if w_held:
            grid = (nq, nm)
            x_map = lambda j, i: (i, 0)
            w_map = lambda j, i: (j, 0)
            o_map = lambda j, i: (i, j)
        else:
            grid = (nm, nq)
            x_map = lambda i, j: (i, 0)
            w_map = lambda i, j: (j, 0)
            o_map = lambda i, j: (i, j)
        y2d = pl.pallas_call(
            _linear_single_k_kernel,
            out_shape=jax.ShapeDtypeStruct((M_pad, Q_pad), out_dtype),
            grid_spec=pltpu.PrefetchScalarGridSpec(
                num_scalar_prefetch=0,
                grid=grid,
                in_specs=[pl.BlockSpec((tm, H_pad), x_map),
                          pl.BlockSpec((tq, H_pad), w_map)],
                out_specs=pl.BlockSpec((tm, tq), o_map),
            ),
            compiler_params=pltpu.CompilerParams(
                dimension_semantics=("parallel", "parallel"),
                vmem_limit_bytes=vmem_limit,
            ),
            cost_estimate=cost,
        )(xc, wc)
    else:
        if w_held:
            grid = (nq, nm, nk)
            x_map = lambda j, i, k: (i, k)
            w_map = lambda j, i, k: (j, k)
            o_map = lambda j, i, k: (i, j)
        else:
            grid = (nm, nq, nk)
            x_map = lambda i, j, k: (i, k)
            w_map = lambda i, j, k: (j, k)
            o_map = lambda i, j, k: (i, j)
        y2d = pl.pallas_call(
            _linear_acc_kernel,
            out_shape=jax.ShapeDtypeStruct((M_pad, Q_pad), out_dtype),
            grid_spec=pltpu.PrefetchScalarGridSpec(
                num_scalar_prefetch=0,
                grid=grid,
                in_specs=[pl.BlockSpec((tm, th), x_map),
                          pl.BlockSpec((tq, th), w_map)],
                out_specs=pl.BlockSpec((tm, tq), o_map),
                scratch_shapes=[pltpu.VMEM((tm, tq), jnp.float32)],
            ),
            compiler_params=pltpu.CompilerParams(
                dimension_semantics=("parallel", "parallel", "arbitrary"),
                vmem_limit_bytes=vmem_limit,
            ),
            cost_estimate=cost,
        )(xc, wc)

    y2d = y2d[:M, :Q]
    return y2d.reshape(*orig_shape[:-1], Q)


if __name__ == "__main__":
    k1, k2, k3, k4, k5, k6 = jax.random.split(jax.random.PRNGKey(0), 6)

    # ---- case 1: module-sized shapes (full-K fast path) ---------------------
    batch, seq, hidden, ques_sum = 2, 8, 32, 16
    x1 = jax.random.normal(k1, (batch, seq, hidden), dtype=jnp.float32)
    bound = 1.0 / (hidden ** 0.5)
    w1 = jax.random.uniform(k2, (ques_sum, hidden), minval=-bound, maxval=bound,
                            dtype=jnp.float32)
    y1 = mask_question_forward(x1, w1)
    jax.block_until_ready(y1)
    assert y1.shape == (batch, seq, ques_sum)
    assert y1.dtype == x1.dtype
    ref1_bf16 = jnp.einsum("bsh,qh->bsq", x1.astype(jnp.bfloat16),
                           w1.astype(jnp.bfloat16),
                           preferred_element_type=jnp.float32)
    assert jnp.allclose(y1, ref1_bf16, atol=1e-3, rtol=1e-3)
    ref1_f32 = jnp.einsum("bsh,qh->bsq", x1, w1)
    assert jnp.allclose(y1, ref1_f32, atol=3e-2, rtol=3e-2)

    # ---- case 2: multi M-block, weight-held streaming order -----------------
    M2, H2, Q2 = 1050, 160, 300
    x2 = jax.random.normal(k3, (M2, H2), dtype=jnp.float32)
    b2 = 1.0 / (H2 ** 0.5)
    w2 = jax.random.uniform(k4, (Q2, H2), minval=-b2, maxval=b2,
                            dtype=jnp.float32)
    y2 = mask_question_forward(x2, w2)
    jax.block_until_ready(y2)
    assert y2.shape == (M2, Q2)
    ref2 = jnp.einsum("mh,qh->mq", x2.astype(jnp.bfloat16),
                      w2.astype(jnp.bfloat16),
                      preferred_element_type=jnp.float32)
    assert jnp.allclose(y2, ref2, atol=2e-3, rtol=2e-3)

    # ---- case 3: forced K tiling (accumulator kernel) -----------------------
    M3, H3, Q3 = 64, 256, 192
    x3 = jax.random.normal(k5, (M3, H3), dtype=jnp.float32)
    b3 = 1.0 / (H3 ** 0.5)
    w3 = jax.random.uniform(k6, (Q3, H3), minval=-b3, maxval=b3,
                            dtype=jnp.float32)
    y3 = mask_question_forward(x3, w3, th=128)   # nk = 2 -> acc kernel path
    jax.block_until_ready(y3)
    assert y3.shape == (M3, Q3)
    ref3 = jnp.einsum("mh,qh->mq", x3.astype(jnp.bfloat16),
                      w3.astype(jnp.bfloat16),
                      preferred_element_type=jnp.float32)
    assert jnp.allclose(y3, ref3, atol=2e-3, rtol=2e-3)

    print("KERNEL_OK")
</pallas_src>

<mosaic_0001>
module attributes {stable_mosaic.version = 11 : i64} {
  func.func @_linear_single_k_kernel(%arg0: i32, %arg1: i32, %arg2: memref<16x32xbf16, #tpu.memory_space<vmem>>, %arg3: memref<128x32xbf16, #tpu.memory_space<vmem>>, %arg4: memref<16x128xf32, #tpu.memory_space<vmem>>) attributes {dimension_semantics = [#tpu.dimension_semantics<parallel>, #tpu.dimension_semantics<parallel>], iteration_bounds = array<i64: 1, 1>, scalar_prefetch = 0 : i64, scratch_operands = 0 : i64, tpu.core_type = #tpu.core_type<tc>, window_params = [{transform_indices = @transform_0, window_bounds = array<i64: 16, 32>}, {transform_indices = @transform_1, window_bounds = array<i64: 128, 32>}, {transform_indices = @transform_2, window_bounds = array<i64: 16, 128>}]} {
    %c0 = arith.constant 0 : index
    %c0_0 = arith.constant 0 : index
    %0 = vector.load %arg2[%c0, %c0_0] : memref<16x32xbf16, #tpu.memory_space<vmem>>, vector<16x32xbf16>
    %c0_1 = arith.constant 0 : index
    %c0_2 = arith.constant 0 : index
    %1 = vector.load %arg3[%c0_1, %c0_2] : memref<128x32xbf16, #tpu.memory_space<vmem>>, vector<128x32xbf16>
    %cst = arith.constant dense<0.000000e+00> : vector<16x128xf32>
    %2 = tpu.matmul %0, %1, %cst {dimension_numbers = #tpu.dot_dimension_numbers<[1], [1], [0], [0], [0, 0, 1, 0], [], []>} : vector<16x32xbf16>, vector<128x32xbf16>, vector<16x128xf32> -> vector<16x128xf32>
    %c0_3 = arith.constant 0 : index
    %c0_4 = arith.constant 0 : index
    %3 = vector.load %arg4[%c0_3, %c0_4] : memref<16x128xf32, #tpu.memory_space<vmem>>, vector<16x128xf32>
    tpu.vector_store %arg4[%c0_3, %c0_4], %2 {strides = array<i32>} : memref<16x128xf32, #tpu.memory_space<vmem>>, vector<16x128xf32>,
    return
  }
  func.func @transform_0(%arg0: i32, %arg1: i32) -> (i32, i32) {
    %c0_i32 = arith.constant 0 : i32
    %c0_i32_0 = arith.constant 0 : i32
    return %arg0, %c0_i32 : i32, i32
  }
  func.func @transform_1(%arg0: i32, %arg1: i32) -> (i32, i32) {
    %c0_i32 = arith.constant 0 : i32
    %c0_i32_0 = arith.constant 0 : i32
    return %arg1, %c0_i32 : i32, i32
  }
  func.func @transform_2(%arg0: i32, %arg1: i32) -> (i32, i32) {
    %c0_i32 = arith.constant 0 : i32
    return %arg0, %arg1 : i32, i32
  }
}

</mosaic_0001>

<llo_original>
// kernel: tpu_custom_call.1
$region0: #{tpu_custom_call.1}
  #allocation0 [shape = 'u32[]', space=smem, size = 0x4, offset = 0x4, fixed_abs, tag = 'smem constant byte address 0x4 - core index']
  #allocation1 [shape = 'u32[144,128]{1,0:T(1,128)}', space=vmem, size = 0x12000, scoped, tag = 'internal scratch']
  %s0 = inlined_call_operand.vmem [shape: bf16[16,32], index: 0, kind: input, shape index: {}]
  %s1 = inlined_call_operand.vmem [shape: bf16[128,32], index: 1, kind: input, shape index: {}]
  %s2 = inlined_call_operand.hbm [shape: f32[16,128], index: 2, kind: output, shape index: {}]
  %s3 = sld [smem:[#allocation0]]
  $region18: #{tpu_custom_call.1} parent=0
    _
  %s5 = ssub.s32 1, %s3
  %s6 = scalar_select 0, %s5, %s3
  $region1: #{tpu_custom_call.1} parent=0
    #allocation2 [shape = 'u8[8192]{0}', space=vmem, size = 0x2000, scoped, tag = 'output window, operand 0, single buffered']
    #allocation3 [shape = 's32[1]{0}', space=sflag, size = 0x4, scoped, tag = 'scoped memory for tpu_custom_call.1']
    %7 = vsyncpa [#allocation3], 0
    // Predicated region
    $region2: #{tpu_custom_call.1} parent=1 // pred_check
      _
    $region3: #{tpu_custom_call.1} parent=1 // pred_check_branch
      %9 = sbr.rel (0) target = $region5
    $region4: #{tpu_custom_call.1} parent=1 // pred_region
      _
    $region5: #{tpu_custom_call.1} parent=1 // pred_fallthru
      _
    // Predicated region
    $region6: #{tpu_custom_call.1} parent=1 // pred_check
      _
    $region7: #{tpu_custom_call.1} parent=1 // pred_check_branch
      %11 = sbr.rel (0) target = $region9
    $region8: #{tpu_custom_call.1} parent=1 // pred_region
      _
    $region9: #{tpu_custom_call.1} parent=1 // pred_fallthru
      _
    %v13 = vld [vmem:[%s0] sm:$0xf]
    %v14 = vld [vmem:[%s0 + $0x4] sm:$0xf]
    %v15 = vld [vmem:[%s1] sm:$0xf]
    %v16 = vld [vmem:[%s1 + $0x4] sm:$0xf]
    %v17 = vld [vmem:[%s1 + $0x8] sm:$0xf]
    %v18 = vld [vmem:[%s1 + $0xc] sm:$0xf]
    %v19 = vld [vmem:[%s1 + $0x10] sm:$0xf]
    %v20 = vld [vmem:[%s1 + $0x14] sm:$0xf]
    %v21 = vld [vmem:[%s1 + $0x18] sm:$0xf]
    %v22 = vld [vmem:[%s1 + $0x1c] sm:$0xf]
    %v23 = vld [vmem:[%s1 + $0x20] sm:$0xf]
    %v24 = vld [vmem:[%s1 + $0x24] sm:$0xf]
    %v25 = vld [vmem:[%s1 + $0x28] sm:$0xf]
    %v26 = vld [vmem:[%s1 + $0x2c] sm:$0xf]
    %v27 = vld [vmem:[%s1 + $0x30] sm:$0xf]
    %v28 = vld [vmem:[%s1 + $0x34] sm:$0xf]
    %v29 = vld [vmem:[%s1 + $0x38] sm:$0xf]
    %v30 = vld [vmem:[%s1 + $0x3c] sm:$0xf]
    %v33 = vunpack.c.l.b16 %v13
    %v34 = vunpack.c.l.b16 %v14
    %v35 = vpack.c.b16 %v34, %v33
    %v52 = vunpack.c.l.b16 %v15
    %v53 = vunpack.c.l.b16 %v16
    %v54 = vunpack.c.l.b16 %v17
    %v55 = vunpack.c.l.b16 %v18
    %v56 = vunpack.c.l.b16 %v19
    %v57 = vunpack.c.l.b16 %v20
    %v58 = vunpack.c.l.b16 %v21
    %v59 = vunpack.c.l.b16 %v22
    %v60 = vunpack.c.l.b16 %v23
    %v61 = vunpack.c.l.b16 %v24
    %v62 = vunpack.c.l.b16 %v25
    %v63 = vunpack.c.l.b16 %v26
    %v64 = vunpack.c.l.b16 %v27
    %v65 = vunpack.c.l.b16 %v28
    %v66 = vunpack.c.l.b16 %v29
    %v67 = vunpack.c.l.b16 %v30
    %v68 = vpack.c.b16 %v53, %v52
    %v69 = vpack.c.b16 %v55, %v54
    %v70 = vpack.c.b16 %v57, %v56
    %v71 = vpack.c.b16 %v59, %v58
    %v72 = vpack.c.b16 %v61, %v60
    %v73 = vpack.c.b16 %v63, %v62
    %v74 = vpack.c.b16 %v65, %v64
    %v75 = vpack.c.b16 %v67, %v66
    %vm76 = vcmask 261120
    %v78 = vsel %vm76, %v35, 0
    %v81 = vsel %vm76, %v68, 0
    %v84 = vsel %vm76, %v69, 0
    %v87 = vsel %vm76, %v70, 0
    %v90 = vsel %vm76, %v71, 0
    %v93 = vsel %vm76, %v72, 0
    %v96 = vsel %vm76, %v73, 0
    %v99 = vsel %vm76, %v74, 0
    %v102 = vsel %vm76, %v75, 0
    %104 = vmatprep.subr.bf16.mxu0 0
    %105 = vmatpush1.bf16.xpose.msra.mxu0 %v81
    %106 = vmatprep.subr.bf16.mxu0 0
    %107 = vmatpush1.bf16.xpose.msra.mxu0 %v84
    %108 = vmatprep.subr.bf16.mxu0 0
    %109 = vmatpush1.bf16.xpose.msra.mxu0 %v87
    %110 = vmatprep.subr.bf16.mxu0 0
    %111 = vmatpush1.bf16.xpose.msra.mxu0 %v90
    %112 = vmatprep.subr.bf16.mxu0 0
    %113 = vmatpush1.bf16.xpose.msra.mxu0 %v93
    %114 = vmatprep.subr.bf16.mxu0 0
    %115 = vmatpush1.bf16.xpose.msra.mxu0 %v96
    %116 = vmatprep.subr.bf16.mxu0 0
    %117 = vmatpush1.bf16.xpose.msra.mxu0 %v99
    %118 = vmatprep.subr.bf16.mxu0 0
    %119 = vmatpush1.bf16.xpose.msra.mxu0 %v102
    %120 = vmatprep.subr.bf16.mxu0 0
    %121 = vmatpush1.bf16.xpose.msra.mxu0 0
    %122 = vmatprep.subr.bf16.mxu0 0
    %123 = vmatpush1.bf16.xpose.msra.mxu0 0
    %124 = vmatprep.subr.bf16.mxu0 0
    %125 = vmatpush1.bf16.xpose.msra.mxu0 0
    %126 = vmatprep.subr.bf16.mxu0 0
    %127 = vmatpush1.bf16.xpose.msra.mxu0 0
    %128 = vmatprep.subr.bf16.mxu0 0
    %129 = vmatpush1.bf16.xpose.msra.mxu0 0
    %130 = vmatprep.subr.bf16.mxu0 0
    %131 = vmatpush1.bf16.xpose.msra.mxu0 0
    %132 = vmatprep.subr.bf16.mxu0 0
    %133 = vmatpush1.bf16.xpose.msra.mxu0 0
    %134 = vmatprep.subr.bf16.mxu0 0
    %135 = vmatpush1.bf16.xpose.msra.mxu0 0
    %136 = vmatprep.mubr.bf16.mxu0 0
    %137 = vmatmul.mubr.bf16.gmra.mrb[0].mxu0 %v78
    %v138 = vpop.f32.mrb[0].mxu0
    %v139 = vadd.f32 0.0, %v138
    %v140 = vpop.f32.mrb[0].mxu0
    %v141 = vpop.f32.mrb[0].mxu0
    %v142 = vadd.f32 0.0, %v141
    %v143 = vpop.f32.mrb[0].mxu0
    %144 = vdwg.mxu0
    %145 = vst [vmem:[#allocation2] sm:$0xff] %v139
    %146 = vst [vmem:[#allocation2 + $0x8] sm:$0xff] %v142
    // Predicated region
    $region10: #{tpu_custom_call.1} parent=1 // pred_check
      _
    $region11: #{tpu_custom_call.1} parent=1 // pred_check_branch
      %148 = sbr.rel (0) target = $region13
    $region12: #{tpu_custom_call.1} parent=1 // pred_region
      %s150 = ssub.s32 256, 256
      %151 = vsyncadd [#allocation3], %s150
      %s152 = sshll.u32 [#allocation2], 4
      %s153 = int_to_ptr.vmem [resolvable:$true] %s152
      %158 = dma.vmem_to_hbm [thread:$0]  %s153, 256, %s2, [#allocation3], 128, 128, 8
    $region13: #{tpu_custom_call.1} parent=1 // pred_fallthru
      _
    // Predicated region
    $region14: #{tpu_custom_call.1} parent=1 // pred_check
      _
    $region15: #{tpu_custom_call.1} parent=1 // pred_check_branch
      %160 = sbr.rel (0) target = $region17
    $region16: #{tpu_custom_call.1} parent=1 // pred_region
      %161 = dma.done [#allocation3], 256
    $region17: #{tpu_custom_call.1} parent=1 // pred_fallthru
      _
    %162 = vsyncpa [#allocation3], 1

</llo_original>
